<compile_context>
chip_gen: v7x
topology: tpu7x:2x2x1
jax: 0.10.0
libtpu: 0.0.40
codegen_flags: <defaults>
</compile_context>

<pallas_src>
import functools

import jax
import jax.numpy as jnp
from jax import lax
from jax.experimental import pallas as pl
from jax.experimental.pallas import tpu as pltpu

_LANE = 128


def _round_up(x, m):
    return (x + m - 1) // m * m


def _closed_loop_kernel(
    x_ref, w1a_ref, b1_ref, w2_ref, b2_ref, w3bt_ref, b3bt_ref, out_ref,
    *, num_steps, hidden, interleave, compute_dtype,
):
    """Full num_steps rollout; state stays resident in vregs.

    Layout: batch on lanes.  x_ref: (n, bt).  Weights are pre-transposed in
    the wrapper so every layer is `W @ X`:
        w1a  : (h + n, n)  rows = [w1^T ; A]
        w2   : (h, h)      = w2^T
        w3bt : (n, h)      = (w3 @ B^T)^T
        b1/b2: (h, 1),  b3bt: (n, 1)   (lane-broadcast at the add)
    """
    cd = compute_dtype
    w1a = w1a_ref[...].astype(cd)
    w2 = w2_ref[...].astype(cd)
    w3bt = w3bt_ref[...].astype(cd)
    b1 = b1_ref[...]       # (h, 1) f32 — broadcast happens inside the add
    b2 = b2_ref[...]       # (h, 1)
    b3bt = b3bt_ref[...]   # (n, 1)

    def step(x):
        # One MXU push for [w1^T ; A] @ x; split on an aligned sublane boundary.
        y = jnp.dot(w1a, x.astype(cd), preferred_element_type=jnp.float32)
        h1 = jnp.maximum(y[:hidden, :] + b1, 0.0)
        xa = y[hidden:, :]                                    # A @ x
        h2 = jnp.maximum(
            jnp.dot(w2, h1.astype(cd), preferred_element_type=jnp.float32) + b2,
            0.0,
        )
        # Folded controller output + dynamics:
        #   x' = A x + (w3 B^T)^T h2 + (b3 B^T)^T
        return (
            xa
            + jnp.dot(w3bt, h2.astype(cd), preferred_element_type=jnp.float32)
            + b3bt
        )

    x = x_ref[...].astype(jnp.float32)

    if interleave:
        # Two independent batch sub-chains per step: the scheduler can overlap
        # their serial MXU chains.  half is a multiple of 128 (lane-aligned).
        half = x.shape[1] // 2
        xa_, xb_ = x[:, :half], x[:, half:]
        if num_steps <= 12:
            for _ in range(num_steps):
                xa_, xb_ = step(xa_), step(xb_)
        else:
            xa_, xb_ = lax.fori_loop(
                0, num_steps,
                lambda _, c: (step(c[0]), step(c[1])),
                (xa_, xb_),
                unroll=4,
            )
        out_ref[:, :half] = xa_.astype(out_ref.dtype)
        out_ref[:, half:] = xb_.astype(out_ref.dtype)
    else:
        if num_steps <= 12:
            for _ in range(num_steps):
                x = step(x)
        else:
            x = lax.fori_loop(0, num_steps, lambda _, c: step(c), x, unroll=8)
        out_ref[...] = x.astype(out_ref.dtype)


def closed_loop_dynamics(xt, params, num_steps=1, use_bf16=False):
    """Pallas wrapper. xt: (batch, state_dim) float32.

    params = (w1, b1, w2, b2, w3, b3, a_t, b_t) with weights stored so every
    layer of the original module is `y = x @ W + b` (a_t = A^T, b_t = B^T).

    Note: keep use_bf16=False on v5e (no bf16 VPU; chain is latency bound so
    bf16 MXU passes buy nothing at these shapes).
    """
    w1, b1, w2, b2, w3, b3, a_t, b_t = params
    batch, state_dim = xt.shape
    hidden = w1.shape[1]
    h_pad = _round_up(hidden, 8)

    # --- transposed-weight formulation (batch on lanes), done once here ---
    w1t = w1.T                   # (hidden, n)
    w2t = w2.T                   # (hidden, hidden)
    a = a_t.T                    # (n, n)   original A
    w3bt = jnp.dot(w3, b_t).T    # (n, hidden)  = (w3 @ B^T)^T
    b3bt = jnp.dot(b3, b_t).T    # (n, 1)
    b1t = b1.T                   # (hidden, 1)
    b2t = b2.T                   # (hidden, 1)

    # Zero-pad hidden to a sublane multiple so the [w1^T ; A] row split in the
    # kernel is a tile-boundary selection (exact: padded rows stay 0 through
    # the relu and multiply zero columns downstream).
    if h_pad != hidden:
        dh = h_pad - hidden
        w1t = jnp.pad(w1t, ((0, dh), (0, 0)))
        b1t = jnp.pad(b1t, ((0, dh), (0, 0)))
        w2t = jnp.pad(w2t, ((0, dh), (0, dh)))
        b2t = jnp.pad(b2t, ((0, dh), (0, 0)))
        w3bt = jnp.pad(w3bt, ((0, 0), (0, dh)))

    w1a = jnp.concatenate([w1t, a], axis=0)      # (h_pad + n, n)

    # --- batch tiling: batch on the lane axis ---
    # The tile cap is vreg-derived (64-entry vreg file is what binds here;
    # weights are ~KBs so VMEM never binds on any generation).  For batch >=
    # 256 the grid gets >= 2 tiles so v7x's second TensorCore is used.
    padded = _round_up(batch, _LANE)
    MAX_TILE = 512
    if padded >= 2 * _LANE:
        batch_tile = min(MAX_TILE, _round_up((padded + 1) // 2, _LANE))
    else:
        batch_tile = padded
    padded = _round_up(padded, batch_tile)
    # Interleave two sub-chains only when each half is lane-tile aligned.
    interleave = (batch_tile % (2 * _LANE) == 0) and batch_tile >= 2 * _LANE

    x_t = xt.T                                   # (n, batch): batch -> lanes
    if padded != batch:
        x_t = jnp.pad(x_t, ((0, 0), (0, padded - batch)))

    compute_dtype = jnp.bfloat16 if use_bf16 else jnp.float32
    kernel = functools.partial(
        _closed_loop_kernel,
        num_steps=num_steps,
        hidden=h_pad,
        interleave=interleave,
        compute_dtype=compute_dtype,
    )

    tiled = lambda i: (0, i)     # state tiles walk the lane (batch) axis
    full = lambda i: (0, 0)      # weights / biases stay VMEM-resident

    out_t = pl.pallas_call(
        kernel,
        out_shape=jax.ShapeDtypeStruct((state_dim, padded), xt.dtype),
        grid=(padded // batch_tile,),
        in_specs=[
            pl.BlockSpec((state_dim, batch_tile), tiled),
            pl.BlockSpec(w1a.shape, full),
            pl.BlockSpec(b1t.shape, full),
            pl.BlockSpec(w2t.shape, full),
            pl.BlockSpec(b2t.shape, full),
            pl.BlockSpec(w3bt.shape, full),
            pl.BlockSpec(b3bt.shape, full),
        ],
        out_specs=pl.BlockSpec((state_dim, batch_tile), tiled),
        input_output_aliases={0: 0},
        compiler_params=pltpu.CompilerParams(
            dimension_semantics=("parallel",),
        ),
    )(x_t, w1a, b1t, w2t, b2t, w3bt, b3bt)

    out = out_t.T
    return out if padded == batch else out[:batch]


def closed_loop_dynamics_ref(xt, params, num_steps=1):
    """Pure-JAX reference implementing the original (unfolded) semantics."""
    w1, b1, w2, b2, w3, b3, a_t, b_t = params
    x = xt.astype(jnp.float32)
    for _ in range(num_steps):
        h1 = jnp.maximum(x @ w1 + b1, 0.0)
        h2 = jnp.maximum(h1 @ w2 + b2, 0.0)
        u = h2 @ w3 + b3
        x = x @ a_t + u @ b_t
    return x.astype(xt.dtype)


def make_params(key, state_dim, control_dim, hidden):
    """Deterministic synthetic controller + dynamics parameters."""
    keys = jax.random.split(key, 8)
    scale = 0.3
    w1 = scale * jax.random.normal(keys[0], (state_dim, hidden), jnp.float32)
    b1 = scale * jax.random.normal(keys[1], (1, hidden), jnp.float32)
    w2 = scale * jax.random.normal(keys[2], (hidden, hidden), jnp.float32)
    b2 = scale * jax.random.normal(keys[3], (1, hidden), jnp.float32)
    w3 = scale * jax.random.normal(keys[4], (hidden, control_dim), jnp.float32)
    b3 = scale * jax.random.normal(keys[5], (1, control_dim), jnp.float32)
    # discrete-time linear dynamics, stored transposed: x' = x @ A^T + u @ B^T
    a = jnp.eye(state_dim, dtype=jnp.float32) + 0.05 * jax.random.normal(
        keys[6], (state_dim, state_dim), jnp.float32
    )
    b = 0.1 * jax.random.normal(keys[7], (state_dim, control_dim), jnp.float32)
    return (w1, b1, w2, b2, w3, b3, a.T, b.T)


if __name__ == "__main__":
    STATE_DIM = 4
    CONTROL_DIM = 2
    HIDDEN = 32

    key = jax.random.PRNGKey(0)
    k_x, k_p, k_x2 = jax.random.split(key, 3)
    params = make_params(k_p, STATE_DIM, CONTROL_DIM, HIDDEN)

    # Small batch / short rollout: single tile, fully unrolled, f32 path.
    xt = jax.random.normal(k_x, (8, STATE_DIM), jnp.float32)
    ref = closed_loop_dynamics_ref(xt, params, num_steps=3)
    out = jax.block_until_ready(closed_loop_dynamics(xt, params, num_steps=3))
    assert out.shape == (8, STATE_DIM)
    assert jnp.allclose(out, ref, atol=1e-4, rtol=1e-4), (out, ref)

    # Larger batch / longer rollout: exercises lane padding, the 2-tile grid
    # (megacore split), the interleaved dual-chain path and the fori_loop.
    xt2 = jax.random.normal(k_x2, (384, STATE_DIM), jnp.float32)
    ref2 = closed_loop_dynamics_ref(xt2, params, num_steps=16)
    out2 = jax.block_until_ready(
        closed_loop_dynamics(xt2, params, num_steps=16)
    )
    assert out2.shape == (384, STATE_DIM)
    assert jnp.allclose(out2, ref2, atol=2e-3, rtol=2e-3), float(
        jnp.max(jnp.abs(out2 - ref2))
    )

    # Opt-in bf16 MXU path (numerics intentionally looser; not for v5e).
    out_bf16 = jax.block_until_ready(
        closed_loop_dynamics(xt, params, num_steps=3, use_bf16=True)
    )
    assert out_bf16.shape == (8, STATE_DIM)
    assert bool(jnp.all(jnp.isfinite(out_bf16)))

    print("KERNEL_OK")
</pallas_src>

<mosaic_0001>
module attributes {stable_mosaic.version = 11 : i64} {
  func.func @_closed_loop_kernel(%arg0: i32, %arg1: memref<4x128xf32, #tpu.memory_space<vmem>>, %arg2: memref<36x4xf32, #tpu.memory_space<vmem>>, %arg3: memref<32x1xf32, #tpu.memory_space<vmem>>, %arg4: memref<32x32xf32, #tpu.memory_space<vmem>>, %arg5: memref<32x1xf32, #tpu.memory_space<vmem>>, %arg6: memref<4x32xf32, #tpu.memory_space<vmem>>, %arg7: memref<4x1xf32, #tpu.memory_space<vmem>>, %arg8: memref<4x128xf32, #tpu.memory_space<vmem>>) attributes {dimension_semantics = [#tpu.dimension_semantics<parallel>], iteration_bounds = array<i64: 1>, scalar_prefetch = 0 : i64, scratch_operands = 0 : i64, tpu.core_type = #tpu.core_type<tc>, window_params = [{transform_indices = @transform_0, window_bounds = array<i64: 4, 128>}, {pipeline_mode = #tpu.pipeline_mode<synchronous>, transform_indices = @transform_1, window_bounds = array<i64: 36, 4>}, {pipeline_mode = #tpu.pipeline_mode<synchronous>, transform_indices = @transform_2, window_bounds = array<i64: 32, 1>}, {pipeline_mode = #tpu.pipeline_mode<synchronous>, transform_indices = @transform_3, window_bounds = array<i64: 32, 32>}, {pipeline_mode = #tpu.pipeline_mode<synchronous>, transform_indices = @transform_4, window_bounds = array<i64: 32, 1>}, {pipeline_mode = #tpu.pipeline_mode<synchronous>, transform_indices = @transform_5, window_bounds = array<i64: 4, 32>}, {pipeline_mode = #tpu.pipeline_mode<synchronous>, transform_indices = @transform_6, window_bounds = array<i64: 4, 1>}, {transform_indices = @transform_7, window_bounds = array<i64: 4, 128>}]} {
    %c0 = arith.constant 0 : index
    %c0_0 = arith.constant 0 : index
    %0 = vector.load %arg2[%c0, %c0_0] : memref<36x4xf32, #tpu.memory_space<vmem>>, vector<36x4xf32>
    %c0_1 = arith.constant 0 : index
    %c0_2 = arith.constant 0 : index
    %1 = vector.load %arg4[%c0_1, %c0_2] : memref<32x32xf32, #tpu.memory_space<vmem>>, vector<32x32xf32>
    %c0_3 = arith.constant 0 : index
    %c0_4 = arith.constant 0 : index
    %2 = vector.load %arg6[%c0_3, %c0_4] : memref<4x32xf32, #tpu.memory_space<vmem>>, vector<4x32xf32>
    %c0_5 = arith.constant 0 : index
    %c0_6 = arith.constant 0 : index
    %3 = vector.load %arg3[%c0_5, %c0_6] : memref<32x1xf32, #tpu.memory_space<vmem>>, vector<32x1xf32>
    %c0_7 = arith.constant 0 : index
    %c0_8 = arith.constant 0 : index
    %4 = vector.load %arg5[%c0_7, %c0_8] : memref<32x1xf32, #tpu.memory_space<vmem>>, vector<32x1xf32>
    %c0_9 = arith.constant 0 : index
    %c0_10 = arith.constant 0 : index
    %5 = vector.load %arg7[%c0_9, %c0_10] : memref<4x1xf32, #tpu.memory_space<vmem>>, vector<4x1xf32>
    %c0_11 = arith.constant 0 : index
    %c0_12 = arith.constant 0 : index
    %6 = vector.load %arg1[%c0_11, %c0_12] : memref<4x128xf32, #tpu.memory_space<vmem>>, vector<4x128xf32>
    %cst = arith.constant dense<0.000000e+00> : vector<36x128xf32>
    %7 = tpu.matmul %0, %6, %cst {dimension_numbers = #tpu.dot_dimension_numbers<[1], [0], [0], [1], [0, 0, 1, 1], [], []>} : vector<36x4xf32>, vector<4x128xf32>, vector<36x128xf32> -> vector<36x128xf32>
    %8 = vector.extract_strided_slice %7 {offsets = [0, 0], sizes = [32, 128], strides = [1, 1]} : vector<36x128xf32> to vector<32x128xf32>
    %9 = vector.broadcast %3 : vector<32x1xf32> to vector<32x128xf32>
    %10 = arith.addf %8, %9 : vector<32x128xf32>
    %cst_13 = arith.constant 0.000000e+00 : f32
    %11 = vector.broadcast %cst_13 : f32 to vector<32x128xf32>
    %12 = arith.maximumf %10, %11 : vector<32x128xf32>
    %13 = vector.extract_strided_slice %7 {offsets = [32, 0], sizes = [4, 128], strides = [1, 1]} : vector<36x128xf32> to vector<4x128xf32>
    %cst_14 = arith.constant dense<0.000000e+00> : vector<32x128xf32>
    %14 = tpu.matmul %1, %12, %cst_14 {dimension_numbers = #tpu.dot_dimension_numbers<[1], [0], [0], [1], [0, 0, 1, 1], [], []>} : vector<32x32xf32>, vector<32x128xf32>, vector<32x128xf32> -> vector<32x128xf32>
    %15 = vector.broadcast %4 : vector<32x1xf32> to vector<32x128xf32>
    %16 = arith.addf %14, %15 : vector<32x128xf32>
    %cst_15 = arith.constant 0.000000e+00 : f32
    %17 = vector.broadcast %cst_15 : f32 to vector<32x128xf32>
    %18 = arith.maximumf %16, %17 : vector<32x128xf32>
    %cst_16 = arith.constant dense<0.000000e+00> : vector<4x128xf32>
    %19 = tpu.matmul %2, %18, %cst_16 {dimension_numbers = #tpu.dot_dimension_numbers<[1], [0], [0], [1], [0, 0, 1, 1], [], []>} : vector<4x32xf32>, vector<32x128xf32>, vector<4x128xf32> -> vector<4x128xf32>
    %20 = arith.addf %13, %19 : vector<4x128xf32>
    %21 = vector.broadcast %5 : vector<4x1xf32> to vector<4x128xf32>
    %22 = arith.addf %20, %21 : vector<4x128xf32>
    %cst_17 = arith.constant dense<0.000000e+00> : vector<36x128xf32>
    %23 = tpu.matmul %0, %22, %cst_17 {dimension_numbers = #tpu.dot_dimension_numbers<[1], [0], [0], [1], [0, 0, 1, 1], [], []>} : vector<36x4xf32>, vector<4x128xf32>, vector<36x128xf32> -> vector<36x128xf32>
    %24 = vector.extract_strided_slice %23 {offsets = [0, 0], sizes = [32, 128], strides = [1, 1]} : vector<36x128xf32> to vector<32x128xf32>
    %25 = vector.broadcast %3 : vector<32x1xf32> to vector<32x128xf32>
    %26 = arith.addf %24, %25 : vector<32x128xf32>
    %cst_18 = arith.constant 0.000000e+00 : f32
    %27 = vector.broadcast %cst_18 : f32 to vector<32x128xf32>
    %28 = arith.maximumf %26, %27 : vector<32x128xf32>
    %29 = vector.extract_strided_slice %23 {offsets = [32, 0], sizes = [4, 128], strides = [1, 1]} : vector<36x128xf32> to vector<4x128xf32>
    %cst_19 = arith.constant dense<0.000000e+00> : vector<32x128xf32>
    %30 = tpu.matmul %1, %28, %cst_19 {dimension_numbers = #tpu.dot_dimension_numbers<[1], [0], [0], [1], [0, 0, 1, 1], [], []>} : vector<32x32xf32>, vector<32x128xf32>, vector<32x128xf32> -> vector<32x128xf32>
    %31 = vector.broadcast %4 : vector<32x1xf32> to vector<32x128xf32>
    %32 = arith.addf %30, %31 : vector<32x128xf32>
    %cst_20 = arith.constant 0.000000e+00 : f32
    %33 = vector.broadcast %cst_20 : f32 to vector<32x128xf32>
    %34 = arith.maximumf %32, %33 : vector<32x128xf32>
    %cst_21 = arith.constant dense<0.000000e+00> : vector<4x128xf32>
    %35 = tpu.matmul %2, %34, %cst_21 {dimension_numbers = #tpu.dot_dimension_numbers<[1], [0], [0], [1], [0, 0, 1, 1], [], []>} : vector<4x32xf32>, vector<32x128xf32>, vector<4x128xf32> -> vector<4x128xf32>
    %36 = arith.addf %29, %35 : vector<4x128xf32>
    %37 = vector.broadcast %5 : vector<4x1xf32> to vector<4x128xf32>
    %38 = arith.addf %36, %37 : vector<4x128xf32>
    %cst_22 = arith.constant dense<0.000000e+00> : vector<36x128xf32>
    %39 = tpu.matmul %0, %38, %cst_22 {dimension_numbers = #tpu.dot_dimension_numbers<[1], [0], [0], [1], [0, 0, 1, 1], [], []>} : vector<36x4xf32>, vector<4x128xf32>, vector<36x128xf32> -> vector<36x128xf32>
    %40 = vector.extract_strided_slice %39 {offsets = [0, 0], sizes = [32, 128], strides = [1, 1]} : vector<36x128xf32> to vector<32x128xf32>
    %41 = vector.broadcast %3 : vector<32x1xf32> to vector<32x128xf32>
    %42 = arith.addf %40, %41 : vector<32x128xf32>
    %cst_23 = arith.constant 0.000000e+00 : f32
    %43 = vector.broadcast %cst_23 : f32 to vector<32x128xf32>
    %44 = arith.maximumf %42, %43 : vector<32x128xf32>
    %45 = vector.extract_strided_slice %39 {offsets = [32, 0], sizes = [4, 128], strides = [1, 1]} : vector<36x128xf32> to vector<4x128xf32>
    %cst_24 = arith.constant dense<0.000000e+00> : vector<32x128xf32>
    %46 = tpu.matmul %1, %44, %cst_24 {dimension_numbers = #tpu.dot_dimension_numbers<[1], [0], [0], [1], [0, 0, 1, 1], [], []>} : vector<32x32xf32>, vector<32x128xf32>, vector<32x128xf32> -> vector<32x128xf32>
    %47 = vector.broadcast %4 : vector<32x1xf32> to vector<32x128xf32>
    %48 = arith.addf %46, %47 : vector<32x128xf32>
    %cst_25 = arith.constant 0.000000e+00 : f32
    %49 = vector.broadcast %cst_25 : f32 to vector<32x128xf32>
    %50 = arith.maximumf %48, %49 : vector<32x128xf32>
    %cst_26 = arith.constant dense<0.000000e+00> : vector<4x128xf32>
    %51 = tpu.matmul %2, %50, %cst_26 {dimension_numbers = #tpu.dot_dimension_numbers<[1], [0], [0], [1], [0, 0, 1, 1], [], []>} : vector<4x32xf32>, vector<32x128xf32>, vector<4x128xf32> -> vector<4x128xf32>
    %52 = arith.addf %45, %51 : vector<4x128xf32>
    %53 = vector.broadcast %5 : vector<4x1xf32> to vector<4x128xf32>
    %54 = arith.addf %52, %53 : vector<4x128xf32>
    %c0_27 = arith.constant 0 : index
    %c0_28 = arith.constant 0 : index
    %55 = vector.load %arg8[%c0_27, %c0_28] : memref<4x128xf32, #tpu.memory_space<vmem>>, vector<4x128xf32>
    tpu.vector_store %arg8[%c0_27, %c0_28], %54 {strides = array<i32>} : memref<4x128xf32, #tpu.memory_space<vmem>>, vector<4x128xf32>,
    return
  }
  func.func @transform_0(%arg0: i32) -> (i32, i32) {
    %c0_i32 = arith.constant 0 : i32
    %c0_i32_0 = arith.constant 0 : i32
    return %c0_i32, %arg0 : i32, i32
  }
  func.func @transform_1(%arg0: i32) -> (i32, i32) {
    %c0_i32 = arith.constant 0 : i32
    %c0_i32_0 = arith.constant 0 : i32
    %c0_i32_1 = arith.constant 0 : i32
    return %c0_i32, %c0_i32_0 : i32, i32
  }
  func.func @transform_2(%arg0: i32) -> (i32, i32) {
    %c0_i32 = arith.constant 0 : i32
    %c0_i32_0 = arith.constant 0 : i32
    %c0_i32_1 = arith.constant 0 : i32
    return %c0_i32, %c0_i32_0 : i32, i32
  }
  func.func @transform_3(%arg0: i32) -> (i32, i32) {
    %c0_i32 = arith.constant 0 : i32
    %c0_i32_0 = arith.constant 0 : i32
    %c0_i32_1 = arith.constant 0 : i32
    return %c0_i32, %c0_i32_0 : i32, i32
  }
  func.func @transform_4(%arg0: i32) -> (i32, i32) {
    %c0_i32 = arith.constant 0 : i32
    %c0_i32_0 = arith.constant 0 : i32
    %c0_i32_1 = arith.constant 0 : i32
    return %c0_i32, %c0_i32_0 : i32, i32
  }
  func.func @transform_5(%arg0: i32) -> (i32, i32) {
    %c0_i32 = arith.constant 0 : i32
    %c0_i32_0 = arith.constant 0 : i32
    %c0_i32_1 = arith.constant 0 : i32
    return %c0_i32, %c0_i32_0 : i32, i32
  }
  func.func @transform_6(%arg0: i32) -> (i32, i32) {
    %c0_i32 = arith.constant 0 : i32
    %c0_i32_0 = arith.constant 0 : i32
    %c0_i32_1 = arith.constant 0 : i32
    return %c0_i32, %c0_i32_0 : i32, i32
  }
  func.func @transform_7(%arg0: i32) -> (i32, i32) {
    %c0_i32 = arith.constant 0 : i32
    %c0_i32_0 = arith.constant 0 : i32
    return %c0_i32, %arg0 : i32, i32
  }
}

</mosaic_0001>

<llo_original>
// kernel: tpu_custom_call.1
$region0: #{tpu_custom_call.1}
  #allocation0 [shape = 'u32[]', space=smem, size = 0x4, offset = 0x4, fixed_abs, tag = 'smem constant byte address 0x4 - core index']
  #allocation1 [shape = 'u32[144,128]{1,0:T(1,128)}', space=vmem, size = 0x12000, scoped, tag = 'internal scratch']
  %s0 = inlined_call_operand.hbm [shape: f32[4,128], index: 0, kind: input, shape index: {}, may-alias: {0,7}]
  %s1 = inlined_call_operand.vmem [shape: f32[36,4], index: 1, kind: input, shape index: {}]
  %s2 = inlined_call_operand.vmem [shape: f32[32,1], index: 2, kind: input, shape index: {}]
  %s3 = inlined_call_operand.vmem [shape: f32[32,32], index: 3, kind: input, shape index: {}]
  %s4 = inlined_call_operand.vmem [shape: f32[32,1], index: 4, kind: input, shape index: {}]
  %s5 = inlined_call_operand.vmem [shape: f32[4,32], index: 5, kind: input, shape index: {}]
  %s6 = inlined_call_operand.vmem [shape: f32[4,1], index: 6, kind: input, shape index: {}]
  %s7 = inlined_call_operand.hbm [shape: f32[4,128], index: 7, kind: output, shape index: {}, may-alias: {0,7}]
  %s8 = sld [smem:[#allocation0]]
  $region42: #{tpu_custom_call.1} parent=0
    _
  %s10 = ssub.s32 1, %s8
  %s11 = scalar_select 0, %s10, %s8
  $region1: #{tpu_custom_call.1} parent=0
    #allocation2 [shape = 'u8[2048]{0}', space=vmem, size = 0x800, scoped, tag = 'input window, operand 0, single buffered']
    #allocation3 [shape = 's32[1]{0}', space=sflag, size = 0x4, scoped, tag = 'scoped memory for tpu_custom_call.1']
    #allocation4 [shape = 's32[1]{0}', space=sflag, size = 0x4, scoped, tag = 'scoped memory for tpu_custom_call.1']
    #allocation5 [shape = 'u8[2048]{0}', space=vmem, size = 0x800, scoped, tag = 'output window, operand 0, single buffered']
    %12 = vsyncpa [#allocation3], 0
    %13 = vsyncpa [#allocation4], 0
    // Predicated region
    $region2: #{tpu_custom_call.1} parent=1 // pred_check
      _
    $region3: #{tpu_custom_call.1} parent=1 // pred_check_branch
      %15 = sbr.rel (0) target = $region5
    $region4: #{tpu_custom_call.1} parent=1 // pred_region
      %s17 = ssub.s32 64, 64
      %18 = vsyncadd [#allocation3], %s17
      %s20 = sshll.u32 [#allocation2], 4
      %s21 = int_to_ptr.vmem [resolvable:$true] %s20
      %23 = dma.hbm_to_vmem [thread:$0]  %s0, 64, %s21, [#allocation3]
    $region5: #{tpu_custom_call.1} parent=1 // pred_fallthru
      _
    // Predicated region
    $region6: #{tpu_custom_call.1} parent=1 // pred_check
      _
    $region7: #{tpu_custom_call.1} parent=1 // pred_check_branch
      %25 = sbr.rel (0) target = $region9
    $region8: #{tpu_custom_call.1} parent=1 // pred_region
      _
    $region9: #{tpu_custom_call.1} parent=1 // pred_fallthru
      _
    // Predicated region
    $region10: #{tpu_custom_call.1} parent=1 // pred_check
      _
    $region11: #{tpu_custom_call.1} parent=1 // pred_check_branch
      %27 = sbr.rel (0) target = $region13
    $region12: #{tpu_custom_call.1} parent=1 // pred_region
      _
    $region13: #{tpu_custom_call.1} parent=1 // pred_fallthru
      _
    // Predicated region
    $region14: #{tpu_custom_call.1} parent=1 // pred_check
      _
    $region15: #{tpu_custom_call.1} parent=1 // pred_check_branch
      %29 = sbr.rel (0) target = $region17
    $region16: #{tpu_custom_call.1} parent=1 // pred_region
      _
    $region17: #{tpu_custom_call.1} parent=1 // pred_fallthru
      _
    // Predicated region
    $region18: #{tpu_custom_call.1} parent=1 // pred_check
      _
    $region19: #{tpu_custom_call.1} parent=1 // pred_check_branch
      %31 = sbr.rel (0) target = $region21
    $region20: #{tpu_custom_call.1} parent=1 // pred_region
      _
    $region21: #{tpu_custom_call.1} parent=1 // pred_fallthru
      _
    // Predicated region
    $region22: #{tpu_custom_call.1} parent=1 // pred_check
      _
    $region23: #{tpu_custom_call.1} parent=1 // pred_check_branch
      %33 = sbr.rel (0) target = $region25
    $region24: #{tpu_custom_call.1} parent=1 // pred_region
      _
    $region25: #{tpu_custom_call.1} parent=1 // pred_fallthru
      _
    // Predicated region
    $region26: #{tpu_custom_call.1} parent=1 // pred_check
      _
    $region27: #{tpu_custom_call.1} parent=1 // pred_check_branch
      %35 = sbr.rel (0) target = $region29
    $region28: #{tpu_custom_call.1} parent=1 // pred_region
      _
    $region29: #{tpu_custom_call.1} parent=1 // pred_fallthru
      _
    // Predicated region
    $region30: #{tpu_custom_call.1} parent=1 // pred_check
      _
    $region31: #{tpu_custom_call.1} parent=1 // pred_check_branch
      %37 = sbr.rel (0) target = $region33
    $region32: #{tpu_custom_call.1} parent=1 // pred_region
      %38 = dma.done [#allocation3], 64
    $region33: #{tpu_custom_call.1} parent=1 // pred_fallthru
      _
    %v39 = vld [vmem:[%s1] sm:$0xff]
    %v40 = vld [vmem:[%s1 + $0x8] sm:$0xff]
    %v41 = vld [vmem:[%s1 + $0x10] sm:$0xff]
    %v42 = vld [vmem:[%s1 + $0x18] sm:$0xff]
    %v43 = vld [vmem:[%s1 + $0x20] sm:$0xf]
    %v44 = vld [vmem:[%s3] sm:$0xff]
    %v45 = vld [vmem:[%s3 + $0x8] sm:$0xff]
    %v46 = vld [vmem:[%s3 + $0x10] sm:$0xff]
    %v47 = vld [vmem:[%s3 + $0x18] sm:$0xff]
    %v48 = vld [vmem:[%s5] sm:$0xf]
    %v49 = vld [vmem:[%s2] sm:$0xff]
    %v50 = vld [vmem:[%s2 + $0x8] sm:$0xff]
    %v51 = vld [vmem:[%s2 + $0x10] sm:$0xff]
    %v52 = vld [vmem:[%s2 + $0x18] sm:$0xff]
    %v53 = vld [vmem:[%s4] sm:$0xff]
    %v54 = vld [vmem:[%s4 + $0x8] sm:$0xff]
    %v55 = vld [vmem:[%s4 + $0x10] sm:$0xff]
    %v56 = vld [vmem:[%s4 + $0x18] sm:$0xff]
    %v57 = vld [vmem:[%s6] sm:$0xf]
    %v58 = vld [vmem:[#allocation2] sm:$0xf]
    %vm59 = vcmask 31744
    %v61 = vsel %vm59, %v39, 0
    %v64 = vsel %vm59, %v40, 0
    %v67 = vsel %vm59, %v41, 0
    %v70 = vsel %vm59, %v42, 0
    %v73 = vsel %vm59, %v43, 0
    %vm75 = vcmask 1043456
    %v77 = vsel %vm75, %v58, 0
    %79 = vmatprep.subr.mxu0 0.0
    %80 = vmatpush1.msra.mxu0 %v77
    %81 = vmatprep.subr.mxu0 0.0
    %82 = vmatpush1.msra.mxu0 0.0
    %83 = vmatprep.subr.mxu0 0.0
    %84 = vmatpush1.msra.mxu0 0.0
    %85 = vmatprep.subr.mxu0 0.0
    %86 = vmatpush1.msra.mxu0 0.0
    %87 = vmatprep.subr.mxu0 0.0
    %88 = vmatpush1.msra.mxu0 0.0
    %89 = vmatprep.subr.mxu0 0.0
    %90 = vmatpush1.msra.mxu0 0.0
    %91 = vmatprep.subr.mxu0 0.0
    %92 = vmatpush1.msra.mxu0 0.0
    %93 = vmatprep.subr.mxu0 0.0
    %94 = vmatpush1.msra.mxu0 0.0
    %95 = vmatprep.subr.mxu0 0.0
    %96 = vmatpush1.msra.mxu0 0.0
    %97 = vmatprep.subr.mxu0 0.0
    %98 = vmatpush1.msra.mxu0 0.0
    %99 = vmatprep.subr.mxu0 0.0
    %100 = vmatpush1.msra.mxu0 0.0
    %101 = vmatprep.subr.mxu0 0.0
    %102 = vmatpush1.msra.mxu0 0.0
    %103 = vmatprep.subr.mxu0 0.0
    %104 = vmatpush1.msra.mxu0 0.0
    %105 = vmatprep.subr.mxu0 0.0
    %106 = vmatpush1.msra.mxu0 0.0
    %107 = vmatprep.subr.mxu0 0.0
    %108 = vmatpush1.msra.mxu0 0.0
    %109 = vmatprep.subr.mxu0 0.0
    %110 = vmatpush1.msra.mxu0 0.0
    %111 = vmatprep.subr.mxu0 0.0
    %112 = vmatpush1.msra.mxu0 0.0
    %113 = vmatprep.subr.mxu0 0.0
    %114 = vmatpush1.msra.mxu0 0.0
    %115 = vmatprep.subr.mxu0 0.0
    %116 = vmatpush1.msra.mxu0 0.0
    %117 = vmatprep.subr.mxu0 0.0
    %118 = vmatpush1.msra.mxu0 0.0
    %119 = vmatprep.subr.mxu0 0.0
    %120 = vmatpush1.msra.mxu0 0.0
    %121 = vmatprep.subr.mxu0 0.0
    %122 = vmatpush1.msra.mxu0 0.0
    %123 = vmatprep.subr.mxu0 0.0
    %124 = vmatpush1.msra.mxu0 0.0
    %125 = vmatprep.subr.mxu0 0.0
    %126 = vmatpush1.msra.mxu0 0.0
    %127 = vmatprep.subr.mxu0 0.0
    %128 = vmatpush1.msra.mxu0 0.0
    %129 = vmatprep.subr.mxu0 0.0
    %130 = vmatpush1.msra.mxu0 0.0
    %131 = vmatprep.subr.mxu0 0.0
    %132 = vmatpush1.msra.mxu0 0.0
    %133 = vmatprep.subr.mxu0 0.0
    %134 = vmatpush1.msra.mxu0 0.0
    %135 = vmatprep.subr.mxu0 0.0
    %136 = vmatpush1.msra.mxu0 0.0
    %137 = vmatprep.subr.mxu0 0.0
    %138 = vmatpush1.msra.mxu0 0.0
    %139 = vmatprep.subr.mxu0 0.0
    %140 = vmatpush1.msra.mxu0 0.0
    %141 = vmatprep.subr.mxu0 0.0
    %142 = vmatpush1.msra.mxu0 0.0
    %143 = vmatprep.mubr.f32.mxu0 0.0
    %144 = vmatmul.mubr.f32.gmra.mrb[0].mxu0 %v61
    %v145 = vpop.f32.mrb[0].mxu0
    %v146 = vadd.f32 0.0, %v145
    %v147 = vpop.f32.mrb[0].mxu0
    %148 = vmatprep.mubr.f32.mxu0 0.0
    %149 = vmatmul.mubr.f32.gmra.mrb[0].mxu0 %v64
    %v150 = vpop.f32.mrb[0].mxu0
    %v151 = vadd.f32 0.0, %v150
    %v152 = vpop.f32.mrb[0].mxu0
    %153 = vmatprep.mubr.f32.mxu0 0.0
    %154 = vmatmul.mubr.f32.gmra.mrb[0].mxu0 %v67
    %v155 = vpop.f32.mrb[0].mxu0
    %v156 = vadd.f32 0.0, %v155
    %v157 = vpop.f32.mrb[0].mxu0
    %158 = vmatprep.mubr.f32.mxu0 0.0
    %159 = vmatmul.mubr.f32.gmra.mrb[0].mxu0 %v70
    %v160 = vpop.f32.mrb[0].mxu0
    %v161 = vadd.f32 0.0, %v160
    %v162 = vpop.f32.mrb[0].mxu0
    %163 = vmatprep.mubr.f32.mxu0 0.0
    %164 = vmatmul.mubr.f32.gmra.mrb[0].mxu0 %v73
    %v165 = vpop.f32.mrb[0].mxu0
    %v166 = vadd.f32 0.0, %v165
    %v167 = vpop.f32.mrb[0].mxu0
    %168 = vdwg.mxu0
    %170 = vset.pattern.permute.xlu0 0
    %171 = vperm.xlu0 %170, %v49
    %v172 = vpop.permute.xlu0 %171
    %175 = vset.pattern.permute.xlu0 0
    %176 = vperm.xlu0 %175, %v50
    %v177 = vpop.permute.xlu0 %176
    %180 = vset.pattern.permute.xlu0 0
    %181 = vperm.xlu0 %180, %v51
    %v182 = vpop.permute.xlu0 %181
    %185 = vset.pattern.permute.xlu0 0
    %186 = vperm.xlu0 %185, %v52
    %v187 = vpop.permute.xlu0 %186
    %v189 = vadd.f32 %v146, %v172
    %v190 = vadd.f32 %v151, %v177
    %v191 = vadd.f32 %v156, %v182
    %v192 = vadd.f32 %v161, %v187
    %v193 = vmax.f32 %v189, 0.0
    %v194 = vmax.f32 %v190, 0.0
    %v195 = vmax.f32 %v191, 0.0
    %v196 = vmax.f32 %v192, 0.0
    %198 = vset.pattern.permute.xlu0 0
    %199 = vperm.xlu0 %198, %v53
    %v200 = vpop.permute.xlu0 %199
    %203 = vset.pattern.permute.xlu0 0
    %204 = vperm.xlu0 %203, %v54
    %v205 = vpop.permute.xlu0 %204
    %208 = vset.pattern.permute.xlu0 0
    %209 = vperm.xlu0 %208, %v55
    %v210 = vpop.permute.xlu0 %209
    %213 = vset.pattern.permute.xlu0 0
    %214 = vperm.xlu0 %213, %v56
    %v215 = vpop.permute.xlu0 %214
    %vm217 = vcmask 261120
    %v219 = vsel %vm217, %v44, 0
    %v222 = vsel %vm217, %v45, 0
    %v225 = vsel %vm217, %v46, 0
    %v228 = vsel %vm217, %v47, 0
    %230 = vmatprep.subr.mxu0 0.0
    %231 = vmatpush1.msra.mxu0 %v193
    %232 = vmatprep.subr.mxu0 0.0
    %233 = vmatpush1.msra.mxu0 %v194
    %234 = vmatprep.subr.mxu0 0.0
    %235 = vmatpush1.msra.mxu0 %v195
    %236 = vmatprep.subr.mxu0 0.0
    %237 = vmatpush1.msra.mxu0 %v196
    %238 = vmatprep.subr.mxu0 0.0
    %239 = vmatpush1.msra.mxu0 0.0
    %240 = vmatprep.subr.mxu0 0.0
    %241 = vmatpush1.msra.mxu0 0.0
    %242 = vmatprep.subr.mxu0 0.0
    %243 = vmatpush1.msra.mxu0 0.0
    %244 = vmatprep.subr.mxu0 0.0
    %245 = vmatpush1.msra.mxu0 0.0
    %246 = vmatprep.subr.mxu0 0.0
    %247 = vmatpush1.msra.mxu0 0.0
    %248 = vmatprep.subr.mxu0 0.0
    %249 = vmatpush1.msra.mxu0 0.0
    %250 = vmatprep.subr.mxu0 0.0
    %251 = vmatpush1.msra.mxu0 0.0
    %252 = vmatprep.subr.mxu0 0.0
    %253 = vmatpush1.msra.mxu0 0.0
    %254 = vmatprep.subr.mxu0 0.0
    %255 = vmatpush1.msra.mxu0 0.0
    %256 = vmatprep.subr.mxu0 0.0
    %257 = vmatpush1.msra.mxu0 0.0
    %258 = vmatprep.subr.mxu0 0.0
    %259 = vmatpush1.msra.mxu0 0.0
    %260 = vmatprep.subr.mxu0 0.0
    %261 = vmatpush1.msra.mxu0 0.0
    %262 = vmatprep.subr.mxu0 0.0
    %263 = vmatpush1.msra.mxu0 0.0
    %264 = vmatprep.subr.mxu0 0.0
    %265 = vmatpush1.msra.mxu0 0.0
    %266 = vmatprep.subr.mxu0 0.0
    %267 = vmatpush1.msra.mxu0 0.0
    %268 = vmatprep.subr.mxu0 0.0
    %269 = vmatpush1.msra.mxu0 0.0
    %270 = vmatprep.subr.mxu0 0.0
    %271 = vmatpush1.msra.mxu0 0.0
    %272 = vmatprep.subr.mxu0 0.0
    %273 = vmatpush1.msra.mxu0 0.0
    %274 = vmatprep.subr.mxu0 0.0
    %275 = vmatpush1.msra.mxu0 0.0
    %276 = vmatprep.subr.mxu0 0.0
    %277 = vmatpush1.msra.mxu0 0.0
    %278 = vmatprep.subr.mxu0 0.0
    %279 = vmatpush1.msra.mxu0 0.0
    %280 = vmatprep.subr.mxu0 0.0
    %281 = vmatpush1.msra.mxu0 0.0
    %282 = vmatprep.subr.mxu0 0.0
    %283 = vmatpush1.msra.mxu0 0.0
    %284 = vmatprep.subr.mxu0 0.0
    %285 = vmatpush1.msra.mxu0 0.0
    %286 = vmatprep.subr.mxu0 0.0
    %287 = vmatpush1.msra.mxu0 0.0
    %288 = vmatprep.subr.mxu0 0.0
    %289 = vmatpush1.msra.mxu0 0.0
    %290 = vmatprep.subr.mxu0 0.0
    %291 = vmatpush1.msra.mxu0 0.0
    %292 = vmatprep.subr.mxu0 0.0
    %293 = vmatpush1.msra.mxu0 0.0
    %294 = vmatprep.mubr.f32.mxu0 0.0
    %295 = vmatmul.mubr.f32.gmra.mrb[0].mxu0 %v219
    %v296 = vpop.f32.mrb[0].mxu0
    %v297 = vadd.f32 %v200, %v296
    %v298 = vpop.f32.mrb[0].mxu0
    %299 = vmatprep.mubr.f32.mxu0 0.0
    %300 = vmatmul.mubr.f32.gmra.mrb[0].mxu0 %v222
    %v301 = vpop.f32.mrb[0].mxu0
    %v302 = vadd.f32 %v205, %v301
    %v303 = vpop.f32.mrb[0].mxu0
    %304 = vmatprep.mubr.f32.mxu0 0.0
    %305 = vmatmul.mubr.f32.gmra.mrb[0].mxu0 %v225
    %v306 = vpop.f32.mrb[0].mxu0
    %v307 = vadd.f32 %v210, %v306
    %v308 = vpop.f32.mrb[0].mxu0
    %309 = vmatprep.mubr.f32.mxu0 0.0
    %310 = vmatmul.mubr.f32.gmra.mrb[0].mxu0 %v228
    %v311 = vpop.f32.mrb[0].mxu0
    %v312 = vadd.f32 %v215, %v311
    %v313 = vpop.f32.mrb[0].mxu0
    %314 = vdwg.mxu0
    %v315 = vmax.f32 %v297, 0.0
    %v316 = vmax.f32 %v302, 0.0
    %v317 = vmax.f32 %v307, 0.0
    %v318 = vmax.f32 %v312, 0.0
    %v320 = vsel %vm217, %v48, 0
    %322 = vmatprep.subr.mxu0 0.0
    %323 = vmatpush1.msra.mxu0 %v315
    %324 = vmatprep.subr.mxu0 0.0
    %325 = vmatpush1.msra.mxu0 %v316
    %326 = vmatprep.subr.mxu0 0.0
    %327 = vmatpush1.msra.mxu0 %v317
    %328 = vmatprep.subr.mxu0 0.0
    %329 = vmatpush1.msra.mxu0 %v318
    %330 = vmatprep.subr.mxu0 0.0
    %331 = vmatpush1.msra.mxu0 0.0
    %332 = vmatprep.subr.mxu0 0.0
    %333 = vmatpush1.msra.mxu0 0.0
    %334 = vmatprep.subr.mxu0 0.0
    %335 = vmatpush1.msra.mxu0 0.0
    %336 = vmatprep.subr.mxu0 0.0
    %337 = vmatpush1.msra.mxu0 0.0
    %338 = vmatprep.subr.mxu0 0.0
    %339 = vmatpush1.msra.mxu0 0.0
    %340 = vmatprep.subr.mxu0 0.0
    %341 = vmatpush1.msra.mxu0 0.0
    %342 = vmatprep.subr.mxu0 0.0
    %343 = vmatpush1.msra.mxu0 0.0
    %344 = vmatprep.subr.mxu0 0.0
    %345 = vmatpush1.msra.mxu0 0.0
    %346 = vmatprep.subr.mxu0 0.0
    %347 = vmatpush1.msra.mxu0 0.0
    %348 = vmatprep.subr.mxu0 0.0
    %349 = vmatpush1.msra.mxu0 0.0
    %350 = vmatprep.subr.mxu0 0.0
    %351 = vmatpush1.msra.mxu0 0.0
    %352 = vmatprep.subr.mxu0 0.0
    %353 = vmatpush1.msra.mxu0 0.0
    %354 = vmatprep.subr.mxu0 0.0
    %355 = vmatpush1.msra.mxu0 0.0
    %356 = vmatprep.subr.mxu0 0.0
    %357 = vmatpush1.msra.mxu0 0.0
    %358 = vmatprep.subr.mxu0 0.0
    %359 = vmatpush1.msra.mxu0 0.0
    %360 = vmatprep.subr.mxu0 0.0
    %361 = vmatpush1.msra.mxu0 0.0
    %362 = vmatprep.subr.mxu0 0.0
    %363 = vmatpush1.msra.mxu0 0.0
    %364 = vmatprep.subr.mxu0 0.0
    %365 = vmatpush1.msra.mxu0 0.0
    %366 = vmatprep.subr.mxu0 0.0
    %367 = vmatpush1.msra.mxu0 0.0
    %368 = vmatprep.subr.mxu0 0.0
    %369 = vmatpush1.msra.mxu0 0.0
    %370 = vmatprep.subr.mxu0 0.0
    %371 = vmatpush1.msra.mxu0 0.0
    %372 = vmatprep.subr.mxu0 0.0
    %373 = vmatpush1.msra.mxu0 0.0
    %374 = vmatprep.subr.mxu0 0.0
    %375 = vmatpush1.msra.mxu0 0.0
    %376 = vmatprep.subr.mxu0 0.0
    %377 = vmatpush1.msra.mxu0 0.0
    %378 = vmatprep.subr.mxu0 0.0
    %379 = vmatpush1.msra.mxu0 0.0
    %380 = vmatprep.subr.mxu0 0.0
    %381 = vmatpush1.msra.mxu0 0.0
    %382 = vmatprep.subr.mxu0 0.0
    %383 = vmatpush1.msra.mxu0 0.0
    %384 = vmatprep.subr.mxu0 0.0
    %385 = vmatpush1.msra.mxu0 0.0
    %386 = vmatprep.mubr.f32.mxu0 0.0
    %387 = vmatmul.mubr.f32.gmra.mrb[0].mxu0 %v320
    %v388 = vpop.f32.mrb[0].mxu0
    %v389 = vadd.f32 0.0, %v388
    %v390 = vpop.f32.mrb[0].mxu0
    %391 = vdwg.mxu0
    %v392 = vadd.f32 %v166, %v389
    %394 = vset.pattern.permute.xlu0 0
    %395 = vperm.xlu0 %394, %v57
    %v396 = vpop.permute.xlu0 %395
    %v398 = vadd.f32 %v392, %v396
    %v400 = vsel %vm75, %v398, 0
    %402 = vmatprep.subr.mxu0 0.0
    %403 = vmatpush1.msra.mxu0 %v400
    %404 = vmatprep.subr.mxu0 0.0
    %405 = vmatpush1.msra.mxu0 0.0
    %406 = vmatprep.subr.mxu0 0.0
    %407 = vmatpush1.msra.mxu0 0.0
    %408 = vmatprep.subr.mxu0 0.0
    %409 = vmatpush1.msra.mxu0 0.0
    %410 = vmatprep.subr.mxu0 0.0
    %411 = vmatpush1.msra.mxu0 0.0
    %412 = vmatprep.subr.mxu0 0.0
    %413 = vmatpush1.msra.mxu0 0.0
    %414 = vmatprep.subr.mxu0 0.0
    %415 = vmatpush1.msra.mxu0 0.0
    %416 = vmatprep.subr.mxu0 0.0
    %417 = vmatpush1.msra.mxu0 0.0
    %418 = vmatprep.subr.mxu0 0.0
    %419 = vmatpush1.msra.mxu0 0.0
    %420 = vmatprep.subr.mxu0 0.0
    %421 = vmatpush1.msra.mxu0 0.0
    %422 = vmatprep.subr.mxu0 0.0
    %423 = vmatpush1.msra.mxu0 0.0
    %424 = vmatprep.subr.mxu0 0.0
    %425 = vmatpush1.msra.mxu0 0.0
    %426 = vmatprep.subr.mxu0 0.0
    %427 = vmatpush1.msra.mxu0 0.0
    %428 = vmatprep.subr.mxu0 0.0
    %429 = vmatpush1.msra.mxu0 0.0
    %430 = vmatprep.subr.mxu0 0.0
    %431 = vmatpush1.msra.mxu0 0.0
    %432 = vmatprep.subr.mxu0 0.0
    %433 = vmatpush1.msra.mxu0 0.0
    %434 = vmatprep.subr.mxu0 0.0
    %435 = vmatpush1.msra.mxu0 0.0
    %436 = vmatprep.subr.mxu0 0.0
    %437 = vmatpush1.msra.mxu0 0.0
    %438 = vmatprep.subr.mxu0 0.0
    %439 = vmatpush1.msra.mxu0 0.0
    %440 = vmatprep.subr.mxu0 0.0
    %441 = vmatpush1.msra.mxu0 0.0
    %442 = vmatprep.subr.mxu0 0.0
    %443 = vmatpush1.msra.mxu0 0.0
    %444 = vmatprep.subr.mxu0 0.0
    %445 = vmatpush1.msra.mxu0 0.0
    %446 = vmatprep.subr.mxu0 0.0
    %447 = vmatpush1.msra.mxu0 0.0
    %448 = vmatprep.subr.mxu0 0.0
    %449 = vmatpush1.msra.mxu0 0.0
    %450 = vmatprep.subr.mxu0 0.0
    %451 = vmatpush1.msra.mxu0 0.0
    %452 = vmatprep.subr.mxu0 0.0
    %453 = vmatpush1.msra.mxu0 0.0
    %454 = vmatprep.subr.mxu0 0.0
    %455 = vmatpush1.msra.mxu0 0.0
    %456 = vmatprep.subr.mxu0 0.0
    %457 = vmatpush1.msra.mxu0 0.0
    %458 = vmatprep.subr.mxu0 0.0
    %459 = vmatpush1.msra.mxu0 0.0
    %460 = vmatprep.subr.mxu0 0.0
    %461 = vmatpush1.msra.mxu0 0.0
    %462 = vmatprep.subr.mxu0 0.0
    %463 = vmatpush1.msra.mxu0 0.0
    %464 = vmatprep.subr.mxu0 0.0
    %465 = vmatpush1.msra.mxu0 0.0
    %466 = vmatprep.mubr.f32.mxu0 0.0
    %467 = vmatmul.mubr.f32.gmra.mrb[0].mxu0 %v61
    %v468 = vpop.f32.mrb[0].mxu0
    %v469 = vadd.f32 0.0, %v468
    %v470 = vpop.f32.mrb[0].mxu0
    %471 = vmatprep.mubr.f32.mxu0 0.0
    %472 = vmatmul.mubr.f32.gmra.mrb[0].mxu0 %v64
    %v473 = vpop.f32.mrb[0].mxu0
    %v474 = vadd.f32 0.0, %v473
    %v475 = vpop.f32.mrb[0].mxu0
    %476 = vmatprep.mubr.f32.mxu0 0.0
    %477 = vmatmul.mubr.f32.gmra.mrb[0].mxu0 %v67
    %v478 = vpop.f32.mrb[0].mxu0
    %v479 = vadd.f32 0.0, %v478
    %v480 = vpop.f32.mrb[0].mxu0
    %481 = vmatprep.mubr.f32.mxu0 0.0
    %482 = vmatmul.mubr.f32.gmra.mrb[0].mxu0 %v70
    %v483 = vpop.f32.mrb[0].mxu0
    %v484 = vadd.f32 0.0, %v483
    %v485 = vpop.f32.mrb[0].mxu0
    %486 = vmatprep.mubr.f32.mxu0 0.0
    %487 = vmatmul.mubr.f32.gmra.mrb[0].mxu0 %v73
    %v488 = vpop.f32.mrb[0].mxu0
    %v489 = vadd.f32 0.0, %v488
    %v490 = vpop.f32.mrb[0].mxu0
    %491 = vdwg.mxu0
    %v492 = vadd.f32 %v469, %v172
    %v493 = vadd.f32 %v474, %v177
    %v494 = vadd.f32 %v479, %v182
    %v495 = vadd.f32 %v484, %v187
    %v496 = vmax.f32 %v492, 0.0
    %v497 = vmax.f32 %v493, 0.0
    %v498 = vmax.f32 %v494, 0.0
    %v499 = vmax.f32 %v495, 0.0
    %500 = vmatprep.subr.mxu0 0.0
    %501 = vmatpush1.msra.mxu0 %v496
    %502 = vmatprep.subr.mxu0 0.0
    %503 = vmatpush1.msra.mxu0 %v497
    %504 = vmatprep.subr.mxu0 0.0
    %505 = vmatpush1.msra.mxu0 %v498
    %506 = vmatprep.subr.mxu0 0.0
    %507 = vmatpush1.msra.mxu0 %v499
    %508 = vmatprep.subr.mxu0 0.0
    %509 = vmatpush1.msra.mxu0 0.0
    %510 = vmatprep.subr.mxu0 0.0
    %511 = vmatpush1.msra.mxu0 0.0
    %512 = vmatprep.subr.mxu0 0.0
    %513 = vmatpush1.msra.mxu0 0.0
    %514 = vmatprep.subr.mxu0 0.0
    %515 = vmatpush1.msra.mxu0 0.0
    %516 = vmatprep.subr.mxu0 0.0
    %517 = vmatpush1.msra.mxu0 0.0
    %518 = vmatprep.subr.mxu0 0.0
    %519 = vmatpush1.msra.mxu0 0.0
    %520 = vmatprep.subr.mxu0 0.0
    %521 = vmatpush1.msra.mxu0 0.0
    %522 = vmatprep.subr.mxu0 0.0
    %523 = vmatpush1.msra.mxu0 0.0
    %524 = vmatprep.subr.mxu0 0.0
    %525 = vmatpush1.msra.mxu0 0.0
    %526 = vmatprep.subr.mxu0 0.0
    %527 = vmatpush1.msra.mxu0 0.0
    %528 = vmatprep.subr.mxu0 0.0
    %529 = vmatpush1.msra.mxu0 0.0
    %530 = vmatprep.subr.mxu0 0.0
    %531 = vmatpush1.msra.mxu0 0.0
    %532 = vmatprep.subr.mxu0 0.0
    %533 = vmatpush1.msra.mxu0 0.0
    %534 = vmatprep.subr.mxu0 0.0
    %535 = vmatpush1.msra.mxu0 0.0
    %536 = vmatprep.subr.mxu0 0.0
    %537 = vmatpush1.msra.mxu0 0.0
    %538 = vmatprep.subr.mxu0 0.0
    %539 = vmatpush1.msra.mxu0 0.0
    %540 = vmatprep.subr.mxu0 0.0
    %541 = vmatpush1.msra.mxu0 0.0
    %542 = vmatprep.subr.mxu0 0.0
    %543 = vmatpush1.msra.mxu0 0.0
    %544 = vmatprep.subr.mxu0 0.0
    %545 = vmatpush1.msra.mxu0 0.0
    %546 = vmatprep.subr.mxu0 0.0
    %547 = vmatpush1.msra.mxu0 0.0
    %548 = vmatprep.subr.mxu0 0.0
    %549 = vmatpush1.msra.mxu0 0.0
    %550 = vmatprep.subr.mxu0 0.0
    %551 = vmatpush1.msra.mxu0 0.0
    %552 = vmatprep.subr.mxu0 0.0
    %553 = vmatpush1.msra.mxu0 0.0
    %554 = vmatprep.subr.mxu0 0.0
    %555 = vmatpush1.msra.mxu0 0.0
    %556 = vmatprep.subr.mxu0 0.0
    %557 = vmatpush1.msra.mxu0 0.0
    %558 = vmatprep.subr.mxu0 0.0
    %559 = vmatpush1.msra.mxu0 0.0
    %560 = vmatprep.subr.mxu0 0.0
    %561 = vmatpush1.msra.mxu0 0.0
    %562 = vmatprep.subr.mxu0 0.0
    %563 = vmatpush1.msra.mxu0 0.0
    %564 = vmatprep.mubr.f32.mxu0 0.0
    %565 = vmatmul.mubr.f32.gmra.mrb[0].mxu0 %v219
    %v566 = vpop.f32.mrb[0].mxu0
    %v567 = vadd.f32 %v200, %v566
    %v568 = vpop.f32.mrb[0].mxu0
    %569 = vmatprep.mubr.f32.mxu0 0.0
    %570 = vmatmul.mubr.f32.gmra.mrb[0].mxu0 %v222
    %v571 = vpop.f32.mrb[0].mxu0
    %v572 = vadd.f32 %v205, %v571
    %v573 = vpop.f32.mrb[0].mxu0
    %574 = vmatprep.mubr.f32.mxu0 0.0
    %575 = vmatmul.mubr.f32.gmra.mrb[0].mxu0 %v225
    %v576 = vpop.f32.mrb[0].mxu0
    %v577 = vadd.f32 %v210, %v576
    %v578 = vpop.f32.mrb[0].mxu0
    %579 = vmatprep.mubr.f32.mxu0 0.0
    %580 = vmatmul.mubr.f32.gmra.mrb[0].mxu0 %v228
    %v581 = vpop.f32.mrb[0].mxu0
    %v582 = vadd.f32 %v215, %v581
    %v583 = vpop.f32.mrb[0].mxu0
    %584 = vdwg.mxu0
    %v585 = vmax.f32 %v567, 0.0
    %v586 = vmax.f32 %v572, 0.0
    %v587 = vmax.f32 %v577, 0.0
    %v588 = vmax.f32 %v582, 0.0
    %589 = vmatprep.subr.mxu0 0.0
    %590 = vmatpush1.msra.mxu0 %v585
    %591 = vmatprep.subr.mxu0 0.0
    %592 = vmatpush1.msra.mxu0 %v586
    %593 = vmatprep.subr.mxu0 0.0
    %594 = vmatpush1.msra.mxu0 %v587
    %595 = vmatprep.subr.mxu0 0.0
    %596 = vmatpush1.msra.mxu0 %v588
    %597 = vmatprep.subr.mxu0 0.0
    %598 = vmatpush1.msra.mxu0 0.0
    %599 = vmatprep.subr.mxu0 0.0
    %600 = vmatpush1.msra.mxu0 0.0
    %601 = vmatprep.subr.mxu0 0.0
    %602 = vmatpush1.msra.mxu0 0.0
    %603 = vmatprep.subr.mxu0 0.0
    %604 = vmatpush1.msra.mxu0 0.0
    %605 = vmatprep.subr.mxu0 0.0
    %606 = vmatpush1.msra.mxu0 0.0
    %607 = vmatprep.subr.mxu0 0.0
    %608 = vmatpush1.msra.mxu0 0.0
    %609 = vmatprep.subr.mxu0 0.0
    %610 = vmatpush1.msra.mxu0 0.0
    %611 = vmatprep.subr.mxu0 0.0
    %612 = vmatpush1.msra.mxu0 0.0
    %613 = vmatprep.subr.mxu0 0.0
    %614 = vmatpush1.msra.mxu0 0.0
    %615 = vmatprep.subr.mxu0 0.0
    %616 = vmatpush1.msra.mxu0 0.0
    %617 = vmatprep.subr.mxu0 0.0
    %618 = vmatpush1.msra.mxu0 0.0
    %619 = vmatprep.subr.mxu0 0.0
    %620 = vmatpush1.msra.mxu0 0.0
    %621 = vmatprep.subr.mxu0 0.0
    %622 = vmatpush1.msra.mxu0 0.0
    %623 = vmatprep.subr.mxu0 0.0
    %624 = vmatpush1.msra.mxu0 0.0
    %625 = vmatprep.subr.mxu0 0.0
    %626 = vmatpush1.msra.mxu0 0.0
    %627 = vmatprep.subr.mxu0 0.0
    %628 = vmatpush1.msra.mxu0 0.0
    %629 = vmatprep.subr.mxu0 0.0
    %630 = vmatpush1.msra.mxu0 0.0
    %631 = vmatprep.subr.mxu0 0.0
    %632 = vmatpush1.msra.mxu0 0.0
    %633 = vmatprep.subr.mxu0 0.0
    %634 = vmatpush1.msra.mxu0 0.0
    %635 = vmatprep.subr.mxu0 0.0
    %636 = vmatpush1.msra.mxu0 0.0
    %637 = vmatprep.subr.mxu0 0.0
    %638 = vmatpush1.msra.mxu0 0.0
    %639 = vmatprep.subr.mxu0 0.0
    %640 = vmatpush1.msra.mxu0 0.0
    %641 = vmatprep.subr.mxu0 0.0
    %642 = vmatpush1.msra.mxu0 0.0
    %643 = vmatprep.subr.mxu0 0.0
    %644 = vmatpush1.msra.mxu0 0.0
    %645 = vmatprep.subr.mxu0 0.0
    %646 = vmatpush1.msra.mxu0 0.0
    %647 = vmatprep.subr.mxu0 0.0
    %648 = vmatpush1.msra.mxu0 0.0
    %649 = vmatprep.subr.mxu0 0.0
    %650 = vmatpush1.msra.mxu0 0.0
    %651 = vmatprep.subr.mxu0 0.0
    %652 = vmatpush1.msra.mxu0 0.0
    %653 = vmatprep.mubr.f32.mxu0 0.0
    %654 = vmatmul.mubr.f32.gmra.mrb[0].mxu0 %v320
    %v655 = vpop.f32.mrb[0].mxu0
    %v656 = vadd.f32 0.0, %v655
    %v657 = vpop.f32.mrb[0].mxu0
    %658 = vdwg.mxu0
    %v659 = vadd.f32 %v489, %v656
    %v660 = vadd.f32 %v659, %v396
    %v662 = vsel %vm75, %v660, 0
    %664 = vmatprep.subr.mxu0 0.0
    %665 = vmatpush1.msra.mxu0 %v662
    %666 = vmatprep.subr.mxu0 0.0
    %667 = vmatpush1.msra.mxu0 0.0
    %668 = vmatprep.subr.mxu0 0.0
    %669 = vmatpush1.msra.mxu0 0.0
    %670 = vmatprep.subr.mxu0 0.0
    %671 = vmatpush1.msra.mxu0 0.0
    %672 = vmatprep.subr.mxu0 0.0
    %673 = vmatpush1.msra.mxu0 0.0
    %674 = vmatprep.subr.mxu0 0.0
    %675 = vmatpush1.msra.mxu0 0.0
    %676 = vmatprep.subr.mxu0 0.0
    %677 = vmatpush1.msra.mxu0 0.0
    %678 = vmatprep.subr.mxu0 0.0
    %679 = vmatpush1.msra.mxu0 0.0
    %680 = vmatprep.subr.mxu0 0.0
    %681 = vmatpush1.msra.mxu0 0.0
    %682 = vmatprep.subr.mxu0 0.0
    %683 = vmatpush1.msra.mxu0 0.0
    %684 = vmatprep.subr.mxu0 0.0
    %685 = vmatpush1.msra.mxu0 0.0
    %686 = vmatprep.subr.mxu0 0.0
    %687 = vmatpush1.msra.mxu0 0.0
    %688 = vmatprep.subr.mxu0 0.0
    %689 = vmatpush1.msra.mxu0 0.0
    %690 = vmatprep.subr.mxu0 0.0
    %691 = vmatpush1.msra.mxu0 0.0
    %692 = vmatprep.subr.mxu0 0.0
    %693 = vmatpush1.msra.mxu0 0.0
    %694 = vmatprep.subr.mxu0 0.0
    %695 = vmatpush1.msra.mxu0 0.0
    %696 = vmatprep.subr.mxu0 0.0
    %697 = vmatpush1.msra.mxu0 0.0
    %698 = vmatprep.subr.mxu0 0.0
    %699 = vmatpush1.msra.mxu0 0.0
    %700 = vmatprep.subr.mxu0 0.0
    %701 = vmatpush1.msra.mxu0 0.0
    %702 = vmatprep.subr.mxu0 0.0
    %703 = vmatpush1.msra.mxu0 0.0
    %704 = vmatprep.subr.mxu0 0.0
    %705 = vmatpush1.msra.mxu0 0.0
    %706 = vmatprep.subr.mxu0 0.0
    %707 = vmatpush1.msra.mxu0 0.0
    %708 = vmatprep.subr.mxu0 0.0
    %709 = vmatpush1.msra.mxu0 0.0
    %710 = vmatprep.subr.mxu0 0.0
    %711 = vmatpush1.msra.mxu0 0.0
    %712 = vmatprep.subr.mxu0 0.0
    %713 = vmatpush1.msra.mxu0 0.0
    %714 = vmatprep.subr.mxu0 0.0
    %715 = vmatpush1.msra.mxu0 0.0
    %716 = vmatprep.subr.mxu0 0.0
    %717 = vmatpush1.msra.mxu0 0.0
    %718 = vmatprep.subr.mxu0 0.0
    %719 = vmatpush1.msra.mxu0 0.0
    %720 = vmatprep.subr.mxu0 0.0
    %721 = vmatpush1.msra.mxu0 0.0
    %722 = vmatprep.subr.mxu0 0.0
    %723 = vmatpush1.msra.mxu0 0.0
    %724 = vmatprep.subr.mxu0 0.0
    %725 = vmatpush1.msra.mxu0 0.0
    %726 = vmatprep.subr.mxu0 0.0
    %727 = vmatpush1.msra.mxu0 0.0
    %728 = vmatprep.mubr.f32.mxu0 0.0
    %729 = vmatmul.mubr.f32.gmra.mrb[0].mxu0 %v61
    %v730 = vpop.f32.mrb[0].mxu0
    %v731 = vadd.f32 0.0, %v730
    %v732 = vpop.f32.mrb[0].mxu0
    %733 = vmatprep.mubr.f32.mxu0 0.0
    %734 = vmatmul.mubr.f32.gmra.mrb[0].mxu0 %v64
    %v735 = vpop.f32.mrb[0].mxu0
    %v736 = vadd.f32 0.0, %v735
    %v737 = vpop.f32.mrb[0].mxu0
    %738 = vmatprep.mubr.f32.mxu0 0.0
    %739 = vmatmul.mubr.f32.gmra.mrb[0].mxu0 %v67
    %v740 = vpop.f32.mrb[0].mxu0
    %v741 = vadd.f32 0.0, %v740
    %v742 = vpop.f32.mrb[0].mxu0
    %743 = vmatprep.mubr.f32.mxu0 0.0
    %744 = vmatmul.mubr.f32.gmra.mrb[0].mxu0 %v70
    %v745 = vpop.f32.mrb[0].mxu0
    %v746 = vadd.f32 0.0, %v745
    %v747 = vpop.f32.mrb[0].mxu0
    %748 = vmatprep.mubr.f32.mxu0 0.0
    %749 = vmatmul.mubr.f32.gmra.mrb[0].mxu0 %v73
    %v750 = vpop.f32.mrb[0].mxu0
    %v751 = vadd.f32 0.0, %v750
    %v752 = vpop.f32.mrb[0].mxu0
    %753 = vdwg.mxu0
    %v754 = vadd.f32 %v731, %v172
    %v755 = vadd.f32 %v736, %v177
    %v756 = vadd.f32 %v741, %v182
    %v757 = vadd.f32 %v746, %v187
    %v758 = vmax.f32 %v754, 0.0
    %v759 = vmax.f32 %v755, 0.0
    %v760 = vmax.f32 %v756, 0.0
    %v761 = vmax.f32 %v757, 0.0
    %762 = vmatprep.subr.mxu0 0.0
    %763 = vmatpush1.msra.mxu0 %v758
    %764 = vmatprep.subr.mxu0 0.0
    %765 = vmatpush1.msra.mxu0 %v759
    %766 = vmatprep.subr.mxu0 0.0
    %767 = vmatpush1.msra.mxu0 %v760
    %768 = vmatprep.subr.mxu0 0.0
    %769 = vmatpush1.msra.mxu0 %v761
    %770 = vmatprep.subr.mxu0 0.0
    %771 = vmatpush1.msra.mxu0 0.0
    %772 = vmatprep.subr.mxu0 0.0
    %773 = vmatpush1.msra.mxu0 0.0
    %774 = vmatprep.subr.mxu0 0.0
    %775 = vmatpush1.msra.mxu0 0.0
    %776 = vmatprep.subr.mxu0 0.0
    %777 = vmatpush1.msra.mxu0 0.0
    %778 = vmatprep.subr.mxu0 0.0
    %779 = vmatpush1.msra.mxu0 0.0
    %780 = vmatprep.subr.mxu0 0.0
    %781 = vmatpush1.msra.mxu0 0.0
    %782 = vmatprep.subr.mxu0 0.0
    %783 = vmatpush1.msra.mxu0 0.0
    %784 = vmatprep.subr.mxu0 0.0
    %785 = vmatpush1.msra.mxu0 0.0
    %786 = vmatprep.subr.mxu0 0.0
    %787 = vmatpush1.msra.mxu0 0.0
    %788 = vmatprep.subr.mxu0 0.0
    %789 = vmatpush1.msra.mxu0 0.0
    %790 = vmatprep.subr.mxu0 0.0
    %791 = vmatpush1.msra.mxu0 0.0
    %792 = vmatprep.subr.mxu0 0.0
    %793 = vmatpush1.msra.mxu0 0.0
    %794 = vmatprep.subr.mxu0 0.0
    %795 = vmatpush1.msra.mxu0 0.0
    %796 = vmatprep.subr.mxu0 0.0
    %797 = vmatpush1.msra.mxu0 0.0
    %798 = vmatprep.subr.mxu0 0.0
    %799 = vmatpush1.msra.mxu0 0.0
    %800 = vmatprep.subr.mxu0 0.0
    %801 = vmatpush1.msra.mxu0 0.0
    %802 = vmatprep.subr.mxu0 0.0
    %803 = vmatpush1.msra.mxu0 0.0
    %804 = vmatprep.subr.mxu0 0.0
    %805 = vmatpush1.msra.mxu0 0.0
    %806 = vmatprep.subr.mxu0 0.0
    %807 = vmatpush1.msra.mxu0 0.0
    %808 = vmatprep.subr.mxu0 0.0
    %809 = vmatpush1.msra.mxu0 0.0
    %810 = vmatprep.subr.mxu0 0.0
    %811 = vmatpush1.msra.mxu0 0.0
    %812 = vmatprep.subr.mxu0 0.0
    %813 = vmatpush1.msra.mxu0 0.0
    %814 = vmatprep.subr.mxu0 0.0
    %815 = vmatpush1.msra.mxu0 0.0
    %816 = vmatprep.subr.mxu0 0.0
    %817 = vmatpush1.msra.mxu0 0.0
    %818 = vmatprep.subr.mxu0 0.0
    %819 = vmatpush1.msra.mxu0 0.0
    %820 = vmatprep.subr.mxu0 0.0
    %821 = vmatpush1.msra.mxu0 0.0
    %822 = vmatprep.subr.mxu0 0.0
    %823 = vmatpush1.msra.mxu0 0.0
    %824 = vmatprep.subr.mxu0 0.0
    %825 = vmatpush1.msra.mxu0 0.0
    %826 = vmatprep.mubr.f32.mxu0 0.0
    %827 = vmatmul.mubr.f32.gmra.mrb[0].mxu0 %v219
    %v828 = vpop.f32.mrb[0].mxu0
    %v829 = vadd.f32 %v200, %v828
    %v830 = vpop.f32.mrb[0].mxu0
    %831 = vmatprep.mubr.f32.mxu0 0.0
    %832 = vmatmul.mubr.f32.gmra.mrb[0].mxu0 %v222
    %v833 = vpop.f32.mrb[0].mxu0
    %v834 = vadd.f32 %v205, %v833
    %v835 = vpop.f32.mrb[0].mxu0
    %836 = vmatprep.mubr.f32.mxu0 0.0
    %837 = vmatmul.mubr.f32.gmra.mrb[0].mxu0 %v225
    %v838 = vpop.f32.mrb[0].mxu0
    %v839 = vadd.f32 %v210, %v838
    %v840 = vpop.f32.mrb[0].mxu0
    %841 = vmatprep.mubr.f32.mxu0 0.0
    %842 = vmatmul.mubr.f32.gmra.mrb[0].mxu0 %v228
    %v843 = vpop.f32.mrb[0].mxu0
    %v844 = vadd.f32 %v215, %v843
    %v845 = vpop.f32.mrb[0].mxu0
    %846 = vdwg.mxu0
    %v847 = vmax.f32 %v829, 0.0
    %v848 = vmax.f32 %v834, 0.0
    %v849 = vmax.f32 %v839, 0.0
    %v850 = vmax.f32 %v844, 0.0
    %851 = vmatprep.subr.mxu0 0.0
    %852 = vmatpush1.msra.mxu0 %v847
    %853 = vmatprep.subr.mxu0 0.0
    %854 = vmatpush1.msra.mxu0 %v848
    %855 = vmatprep.subr.mxu0 0.0
    %856 = vmatpush1.msra.mxu0 %v849
    %857 = vmatprep.subr.mxu0 0.0
    %858 = vmatpush1.msra.mxu0 %v850
    %859 = vmatprep.subr.mxu0 0.0
    %860 = vmatpush1.msra.mxu0 0.0
    %861 = vmatprep.subr.mxu0 0.0
    %862 = vmatpush1.msra.mxu0 0.0
    %863 = vmatprep.subr.mxu0 0.0
    %864 = vmatpush1.msra.mxu0 0.0
    %865 = vmatprep.subr.mxu0 0.0
    %866 = vmatpush1.msra.mxu0 0.0
    %867 = vmatprep.subr.mxu0 0.0
    %868 = vmatpush1.msra.mxu0 0.0
    %869 = vmatprep.subr.mxu0 0.0
    %870 = vmatpush1.msra.mxu0 0.0
    %871 = vmatprep.subr.mxu0 0.0
    %872 = vmatpush1.msra.mxu0 0.0
    %873 = vmatprep.subr.mxu0 0.0
    %874 = vmatpush1.msra.mxu0 0.0
    %875 = vmatprep.subr.mxu0 0.0
    %876 = vmatpush1.msra.mxu0 0.0
    %877 = vmatprep.subr.mxu0 0.0
    %878 = vmatpush1.msra.mxu0 0.0
    %879 = vmatprep.subr.mxu0 0.0
    %880 = vmatpush1.msra.mxu0 0.0
    %881 = vmatprep.subr.mxu0 0.0
    %882 = vmatpush1.msra.mxu0 0.0
    %883 = vmatprep.subr.mxu0 0.0
    %884 = vmatpush1.msra.mxu0 0.0
    %885 = vmatprep.subr.mxu0 0.0
    %886 = vmatpush1.msra.mxu0 0.0
    %887 = vmatprep.subr.mxu0 0.0
    %888 = vmatpush1.msra.mxu0 0.0
    %889 = vmatprep.subr.mxu0 0.0
    %890 = vmatpush1.msra.mxu0 0.0
    %891 = vmatprep.subr.mxu0 0.0
    %892 = vmatpush1.msra.mxu0 0.0
    %893 = vmatprep.subr.mxu0 0.0
    %894 = vmatpush1.msra.mxu0 0.0
    %895 = vmatprep.subr.mxu0 0.0
    %896 = vmatpush1.msra.mxu0 0.0
    %897 = vmatprep.subr.mxu0 0.0
    %898 = vmatpush1.msra.mxu0 0.0
    %899 = vmatprep.subr.mxu0 0.0
    %900 = vmatpush1.msra.mxu0 0.0
    %901 = vmatprep.subr.mxu0 0.0
    %902 = vmatpush1.msra.mxu0 0.0
    %903 = vmatprep.subr.mxu0 0.0
    %904 = vmatpush1.msra.mxu0 0.0
    %905 = vmatprep.subr.mxu0 0.0
    %906 = vmatpush1.msra.mxu0 0.0
    %907 = vmatprep.subr.mxu0 0.0
    %908 = vmatpush1.msra.mxu0 0.0
    %909 = vmatprep.subr.mxu0 0.0
    %910 = vmatpush1.msra.mxu0 0.0
    %911 = vmatprep.subr.mxu0 0.0
    %912 = vmatpush1.msra.mxu0 0.0
    %913 = vmatprep.subr.mxu0 0.0
    %914 = vmatpush1.msra.mxu0 0.0
    %915 = vmatprep.mubr.f32.mxu0 0.0
    %916 = vmatmul.mubr.f32.gmra.mrb[0].mxu0 %v320
    %v917 = vpop.f32.mrb[0].mxu0
    %v918 = vadd.f32 0.0, %v917
    %v919 = vpop.f32.mrb[0].mxu0
    %920 = vdwg.mxu0
    %v921 = vadd.f32 %v751, %v918
    %v922 = vadd.f32 %v921, %v396
    %923 = vst [vmem:[#allocation5] sm:$0xf] %v922
    // Predicated region
    $region34: #{tpu_custom_call.1} parent=1 // pred_check
      _
    $region35: #{tpu_custom_call.1} parent=1 // pred_check_branch
      %925 = sbr.rel (0) target = $region37
    $region36: #{tpu_custom_call.1} parent=1 // pred_region
      %s927 = ssub.s32 64, 64
      %928 = vsyncadd [#allocation4], %s927
      %s930 = sshll.u32 [#allocation5], 4
      %s931 = int_to_ptr.vmem [resolvable:$true] %s930
      %933 = dma.vmem_to_hbm [thread:$0]  %s931, 64, %s7, [#allocation4]
    $region37: #{tpu_custom_call.1} parent=1 // pred_fallthru
      _
    // Predicated region
    $region38: #{tpu_custom_call.1} parent=1 // pred_check
      _
    $region39: #{tpu_custom_call.1} parent=1 // pred_check_branch
      %935 = sbr.rel (0) target = $region41
    $region40: #{tpu_custom_call.1} parent=1 // pred_region
      %936 = dma.done [#allocation4], 64
    $region41: #{tpu_custom_call.1} parent=1 // pred_fallthru
      _
    %937 = vsyncpa [#allocation3], 1
    %938 = vsyncpa [#allocation4], 1

</llo_original>
